<compile_context>
chip_gen: v6e
topology: v6e:2x2x1
jax: 0.10.0
libtpu: 0.0.40
codegen_flags: <defaults>
</compile_context>

<pallas_src>
from functools import partial

import jax
import jax.numpy as jnp
import numpy as np
from jax.experimental import pallas as pl
from jax.experimental.pallas import tpu as pltpu


def _round_up(x, m):
    return (x + m - 1) // m * m


def _vmem_limit_bytes():
    """Scoped-VMEM limit: ~3/4 of physical VMEM, capped at 96 MiB."""
    try:
        cap = int(pltpu.get_tpu_info().vmem_capacity_bytes)
    except Exception:
        return 48 * 1024 * 1024          # safe everywhere (v7x has 64 MiB/TC)
    return int(min(96 * 1024 * 1024, (cap * 3) // 4))


def _mtp_kernel(x_ref, m_ref, w1_ref, b1_ref, w2_ref, b2_ref, out_ref, *,
                tm, n_rows, matmul_dtype):
    i = pl.program_id(0)
    x = x_ref[...]                       # (tm, D) f32, target trajectory rows
    m_i8 = m_ref[...]                    # (tm, 1) int8, 1 where masked

    # Row-validity for the (possibly ragged / overhanging) last block: rows
    # >= n_rows come from a clipped DMA and hold garbage; they are dropped via
    # selects below so even NaN/Inf garbage cannot reach the loss.
    row_ids = i * tm + jax.lax.broadcasted_iota(jnp.int32, (tm, 1), 0)
    masked = (m_i8 != 0) & (row_ids < n_rows)          # (tm, 1) bool

    xm = jnp.where(masked, jnp.float32(0.0), x)        # masked_trajectory[mask] = 0

    # encoder: Linear + ReLU; decoder: Linear  (MXU matmuls, f32 accumulation)
    h = jnp.dot(xm.astype(matmul_dtype), w1_ref[...].astype(matmul_dtype),
                preferred_element_type=jnp.float32) + b1_ref[...]
    h = jnp.maximum(h, 0.0)
    r = jnp.dot(h.astype(matmul_dtype), w2_ref[...].astype(matmul_dtype),
                preferred_element_type=jnp.float32) + b2_ref[...]

    diff = r - x
    contrib = jnp.where(masked, diff * diff, 0.0)       # only selected rows count

    # Partial SSE: (tm//8, 8, D) matches the (8,128) vreg tiling, so this is a
    # relayout-free reshape followed by vreg-wise VPU adds (no XLU reduce).
    d = contrib.shape[-1]
    out_ref[...] = contrib.reshape(tm // 8, 8, d).sum(axis=0)


def masked_trajectory_prediction_loss(trajectory, mask, params, *, tm=None,
                                      matmul_dtype=jnp.float32):
    """trajectory: [B, T, D] f32; mask: [B, T] bool; returns scalar f32 loss."""
    B, T, D = trajectory.shape
    H = params["w1"].shape[1]
    n_rows = B * T

    Hp = _round_up(H, 128)               # hidden dim padded -> lane-dense MXU N/K
    Dl = _round_up(D, 128)               # lane-padded width a (*, D) tile occupies in VMEM
    D8 = _round_up(D, 8)

    # ---- inputs kept in their natural shapes (no padded copy of x) ----------
    x2d = trajectory.reshape(n_rows, D).astype(jnp.float32)
    m2d = mask.reshape(n_rows, 1).astype(jnp.int8)

    # ---- pad ONLY the hidden dim of the params (zeros contribute nothing) ---
    w1 = jnp.pad(params["w1"].astype(jnp.float32), ((0, 0), (0, Hp - H)))
    b1 = jnp.pad(params["b1"].astype(jnp.float32).reshape(1, H),
                 ((0, 0), (0, Hp - H)))
    w2 = jnp.pad(params["w2"].astype(jnp.float32), ((0, Hp - H), (0, 0)))
    b2 = params["b2"].astype(jnp.float32).reshape(1, D)

    vmem_limit = _vmem_limit_bytes()

    if tm is None:
        # Row-tile budget = VMEM limit minus resident weights (single-buffered
        # via pl.Buffered(1)) minus a small reserve for compiler scratch.
        weight_bytes = 4 * (D8 * Hp + Hp * Dl + 8 * Hp + 8 * Dl)
        budget = vmem_limit - weight_bytes - 2 * 1024 * 1024
        per_row = (4 * (2 * Dl          # x tile, double-buffered
                        + Hp            # hidden activation
                        + 3 * Dl)       # recon / diff / contrib temporaries
                   + 2 * 128)           # int8 mask tile (lane-padded), 2 buffers
        tm = budget // per_row if budget > 0 else 32
        tm = max(32, min(int(tm), 4096))
    tm = max(32, (int(tm) // 32) * 32)                 # int8 tile: 32-row multiples
    tm = min(tm, max(32, _round_up(n_rows, 32)))       # never bigger than needed

    n_blocks = pl.cdiv(n_rows, tm)
    grid = (n_blocks,)

    kernel = partial(_mtp_kernel, tm=tm, n_rows=n_rows, matmul_dtype=matmul_dtype)

    # NOTE: if profiling shows exposed input DMA at small tm, bump the x/mask
    # specs to pipeline_mode=pl.Buffered(3).
    partials = pl.pallas_call(
        kernel,
        out_shape=jax.ShapeDtypeStruct((n_blocks * 8, D), jnp.float32),
        grid_spec=pltpu.PrefetchScalarGridSpec(
            num_scalar_prefetch=0,
            grid=grid,
            in_specs=[
                pl.BlockSpec((tm, D), lambda i: (i, 0)),            # x rows
                pl.BlockSpec((tm, 1), lambda i: (i, 0)),            # mask rows (int8)
                pl.BlockSpec((D, Hp), lambda i: (0, 0),
                             pipeline_mode=pl.Buffered(1)),         # W1 resident
                pl.BlockSpec((1, Hp), lambda i: (0, 0),
                             pipeline_mode=pl.Buffered(1)),         # b1
                pl.BlockSpec((Hp, D), lambda i: (0, 0),
                             pipeline_mode=pl.Buffered(1)),         # W2 resident
                pl.BlockSpec((1, D), lambda i: (0, 0),
                             pipeline_mode=pl.Buffered(1)),         # b2
            ],
            out_specs=pl.BlockSpec((8, D), lambda i: (i, 0)),       # per-step partial SSE
        ),
        compiler_params=pltpu.CompilerParams(
            dimension_semantics=("parallel",),      # independent partials (2-TC on v7x)
            vmem_limit_bytes=vmem_limit,
        ),
    )(x2d, m2d, w1, b1, w2, b2)

    # Final reduction + mean over selected elements in plain JAX.
    sse = jnp.sum(partials)
    count = jnp.sum(mask.astype(jnp.float32))
    # TODO(synk): no guard for an all-False mask (reference F.mse_loss on an
    # empty selection is NaN as well).
    return sse / (count * jnp.float32(D))


def _reference_loss(trajectory, mask, params):
    """Plain-JAX reference mirroring the PyTorch forward exactly."""
    masked = jnp.where(mask[..., None], 0.0, trajectory)
    h = jnp.maximum(masked @ params["w1"] + params["b1"], 0.0)
    recon = h @ params["w2"] + params["b2"]
    sel = mask[..., None]
    sse = jnp.sum(jnp.where(sel, (recon - trajectory) ** 2, 0.0))
    n = jnp.sum(mask) * trajectory.shape[-1]
    return sse / n


if __name__ == "__main__":
    def run_case(key, B, T, D, H):
        k_x, k_m, k_w1, k_b1, k_w2, k_b2 = jax.random.split(key, 6)
        trajectory = jax.random.normal(k_x, (B, T, D), dtype=jnp.float32)
        mask = jax.random.bernoulli(k_m, 0.3, (B, T))
        mask = mask.at[0, 0].set(True)   # guarantee a non-empty selection
        params = {
            "w1": jax.random.normal(k_w1, (D, H), dtype=jnp.float32) * 0.1,
            "b1": jax.random.normal(k_b1, (H,), dtype=jnp.float32) * 0.01,
            "w2": jax.random.normal(k_w2, (H, D), dtype=jnp.float32) * 0.1,
            "b2": jax.random.normal(k_b2, (D,), dtype=jnp.float32) * 0.01,
        }
        loss = jax.block_until_ready(
            masked_trajectory_prediction_loss(trajectory, mask, params))
        ref = jax.block_until_ready(_reference_loss(trajectory, mask, params))
        np.testing.assert_allclose(np.asarray(loss), np.asarray(ref),
                                   rtol=1e-5, atol=1e-5)

    key = jax.random.PRNGKey(0)
    k1, k2 = jax.random.split(key)
    run_case(k1, B=4, T=8, D=16, H=32)    # rows exactly fill the 32-row tile
    run_case(k2, B=3, T=7, D=16, H=48)    # ragged rows + padded hidden dim
    print("KERNEL_OK")
</pallas_src>

<mosaic_0001>
module attributes {stable_mosaic.version = 11 : i64} {
  func.func @_mtp_kernel(%arg0: i32, %arg1: memref<32x16xf32, #tpu.memory_space<vmem>>, %arg2: memref<32x1xi8, #tpu.memory_space<vmem>>, %arg3: memref<16x128xf32, #tpu.memory_space<vmem>>, %arg4: memref<1x128xf32, #tpu.memory_space<vmem>>, %arg5: memref<128x16xf32, #tpu.memory_space<vmem>>, %arg6: memref<1x16xf32, #tpu.memory_space<vmem>>, %arg7: memref<8x16xf32, #tpu.memory_space<vmem>>) attributes {dimension_semantics = [#tpu.dimension_semantics<parallel>], iteration_bounds = array<i64: 1>, scalar_prefetch = 0 : i64, scratch_operands = 0 : i64, tpu.core_type = #tpu.core_type<tc>, window_params = [{transform_indices = @transform_0, window_bounds = array<i64: 32, 16>}, {transform_indices = @transform_1, window_bounds = array<i64: 32, 1>}, {pipeline_mode = #tpu.pipeline_mode<synchronous>, transform_indices = @transform_2, window_bounds = array<i64: 16, 128>}, {pipeline_mode = #tpu.pipeline_mode<synchronous>, transform_indices = @transform_3, window_bounds = array<i64: 1, 128>}, {pipeline_mode = #tpu.pipeline_mode<synchronous>, transform_indices = @transform_4, window_bounds = array<i64: 128, 16>}, {pipeline_mode = #tpu.pipeline_mode<synchronous>, transform_indices = @transform_5, window_bounds = array<i64: 1, 16>}, {transform_indices = @transform_6, window_bounds = array<i64: 8, 16>}]} {
    %c0 = arith.constant 0 : index
    %c0_0 = arith.constant 0 : index
    %0 = vector.load %arg1[%c0, %c0_0] : memref<32x16xf32, #tpu.memory_space<vmem>>, vector<32x16xf32>
    %c0_1 = arith.constant 0 : index
    %c0_2 = arith.constant 0 : index
    %1 = vector.load %arg2[%c0_1, %c0_2] : memref<32x1xi8, #tpu.memory_space<vmem>>, vector<32x1xi8>
    %c32_i32 = arith.constant 32 : i32
    %2 = arith.muli %arg0, %c32_i32 : i32
    %3 = tpu.iota {dimensions = array<i32: 0>} : vector<32x1xi32>
    %4 = vector.broadcast %2 : i32 to vector<32x1xi32>
    %5 = arith.addi %4, %3 : vector<32x1xi32>
    %c0_i8 = arith.constant 0 : i8
    %6 = vector.broadcast %c0_i8 : i8 to vector<32x1xi8>
    %7 = arith.cmpi ne, %1, %6 : vector<32x1xi8>
    %c32_i32_3 = arith.constant 32 : i32
    %8 = vector.broadcast %c32_i32_3 : i32 to vector<32x1xi32>
    %9 = arith.cmpi slt, %5, %8 : vector<32x1xi32>
    %10 = arith.andi %7, %9 : vector<32x1xi1>
    %cst = arith.constant 0.000000e+00 : f32
    %11 = vector.shape_cast %10 : vector<32x1xi1> to vector<32x1xi1>
    %12 = vector.broadcast %11 : vector<32x1xi1> to vector<32x16xi1>
    %13 = vector.broadcast %cst : f32 to vector<32x16xf32>
    %14 = arith.select %12, %13, %0 : vector<32x16xi1>, vector<32x16xf32>
    %c0_4 = arith.constant 0 : index
    %c0_5 = arith.constant 0 : index
    %15 = vector.load %arg3[%c0_4, %c0_5] : memref<16x128xf32, #tpu.memory_space<vmem>>, vector<16x128xf32>
    %cst_6 = arith.constant dense<0.000000e+00> : vector<32x128xf32>
    %16 = tpu.matmul %14, %15, %cst_6 {dimension_numbers = #tpu.dot_dimension_numbers<[1], [0], [0], [1], [0, 0, 1, 1], [], []>} : vector<32x16xf32>, vector<16x128xf32>, vector<32x128xf32> -> vector<32x128xf32>
    %c0_7 = arith.constant 0 : index
    %c0_8 = arith.constant 0 : index
    %17 = vector.load %arg4[%c0_7, %c0_8] : memref<1x128xf32, #tpu.memory_space<vmem>>, vector<1x128xf32>
    %18 = vector.broadcast %17 : vector<1x128xf32> to vector<32x128xf32>
    %19 = arith.addf %16, %18 : vector<32x128xf32>
    %cst_9 = arith.constant 0.000000e+00 : f32
    %20 = vector.broadcast %cst_9 : f32 to vector<32x128xf32>
    %21 = arith.maximumf %19, %20 : vector<32x128xf32>
    %c0_10 = arith.constant 0 : index
    %c0_11 = arith.constant 0 : index
    %22 = vector.load %arg5[%c0_10, %c0_11] : memref<128x16xf32, #tpu.memory_space<vmem>>, vector<128x16xf32>
    %cst_12 = arith.constant dense<0.000000e+00> : vector<32x16xf32>
    %23 = tpu.matmul %21, %22, %cst_12 {dimension_numbers = #tpu.dot_dimension_numbers<[1], [0], [0], [1], [0, 0, 1, 1], [], []>} : vector<32x128xf32>, vector<128x16xf32>, vector<32x16xf32> -> vector<32x16xf32>
    %c0_13 = arith.constant 0 : index
    %c0_14 = arith.constant 0 : index
    %24 = vector.load %arg6[%c0_13, %c0_14] : memref<1x16xf32, #tpu.memory_space<vmem>>, vector<1x16xf32>
    %25 = vector.broadcast %24 : vector<1x16xf32> to vector<32x16xf32>
    %26 = arith.addf %23, %25 : vector<32x16xf32>
    %27 = arith.subf %26, %0 : vector<32x16xf32>
    %28 = arith.mulf %27, %27 : vector<32x16xf32>
    %cst_15 = arith.constant 0.000000e+00 : f32
    %29 = vector.shape_cast %10 : vector<32x1xi1> to vector<32x1xi1>
    %30 = vector.broadcast %29 : vector<32x1xi1> to vector<32x16xi1>
    %31 = vector.broadcast %cst_15 : f32 to vector<32x16xf32>
    %32 = arith.select %30, %28, %31 : vector<32x16xi1>, vector<32x16xf32>
    %33 = vector.shape_cast %32 : vector<32x16xf32> to vector<4x8x16xf32>
    %cst_16 = arith.constant dense<0.000000e+00> : vector<8x16xf32>
    %34 = vector.multi_reduction <add>, %33, %cst_16 [0] : vector<4x8x16xf32> to vector<8x16xf32>
    %c0_17 = arith.constant 0 : index
    %c0_18 = arith.constant 0 : index
    %35 = vector.load %arg7[%c0_17, %c0_18] : memref<8x16xf32, #tpu.memory_space<vmem>>, vector<8x16xf32>
    tpu.vector_store %arg7[%c0_17, %c0_18], %34 {strides = array<i32>} : memref<8x16xf32, #tpu.memory_space<vmem>>, vector<8x16xf32>,
    return
  }
  func.func @transform_0(%arg0: i32) -> (i32, i32) {
    %c0_i32 = arith.constant 0 : i32
    %c0_i32_0 = arith.constant 0 : i32
    return %arg0, %c0_i32 : i32, i32
  }
  func.func @transform_1(%arg0: i32) -> (i32, i32) {
    %c0_i32 = arith.constant 0 : i32
    %c0_i32_0 = arith.constant 0 : i32
    return %arg0, %c0_i32 : i32, i32
  }
  func.func @transform_2(%arg0: i32) -> (i32, i32) {
    %c0_i32 = arith.constant 0 : i32
    %c0_i32_0 = arith.constant 0 : i32
    %c0_i32_1 = arith.constant 0 : i32
    return %c0_i32, %c0_i32_0 : i32, i32
  }
  func.func @transform_3(%arg0: i32) -> (i32, i32) {
    %c0_i32 = arith.constant 0 : i32
    %c0_i32_0 = arith.constant 0 : i32
    %c0_i32_1 = arith.constant 0 : i32
    return %c0_i32, %c0_i32_0 : i32, i32
  }
  func.func @transform_4(%arg0: i32) -> (i32, i32) {
    %c0_i32 = arith.constant 0 : i32
    %c0_i32_0 = arith.constant 0 : i32
    %c0_i32_1 = arith.constant 0 : i32
    return %c0_i32, %c0_i32_0 : i32, i32
  }
  func.func @transform_5(%arg0: i32) -> (i32, i32) {
    %c0_i32 = arith.constant 0 : i32
    %c0_i32_0 = arith.constant 0 : i32
    %c0_i32_1 = arith.constant 0 : i32
    return %c0_i32, %c0_i32_0 : i32, i32
  }
  func.func @transform_6(%arg0: i32) -> (i32, i32) {
    %c0_i32 = arith.constant 0 : i32
    %c0_i32_0 = arith.constant 0 : i32
    return %arg0, %c0_i32 : i32, i32
  }
}

</mosaic_0001>

<llo_original>
// kernel: tpu_custom_call.1
$region0: #{tpu_custom_call.1}
  #allocation0 [shape = 'u32[]', space=smem, size = 0x4, offset = 0x4, fixed_abs, tag = 'smem constant byte address 0x4 - core index']
  #allocation1 [shape = 'u32[144,128]{1,0:T(1,128)}', space=vmem, size = 0x12000, scoped, tag = 'internal scratch']
  %s0 = inlined_call_operand.vmem [shape: f32[32,16], index: 0, kind: input, shape index: {}]
  %s1 = inlined_call_operand.vmem [shape: s8[32,1], index: 1, kind: input, shape index: {}]
  %s2 = inlined_call_operand.vmem [shape: f32[16,128], index: 2, kind: input, shape index: {}]
  %s3 = inlined_call_operand.vmem [shape: f32[1,128], index: 3, kind: input, shape index: {}]
  %s4 = inlined_call_operand.vmem [shape: f32[128,16], index: 4, kind: input, shape index: {}]
  %s5 = inlined_call_operand.vmem [shape: f32[1,16], index: 5, kind: input, shape index: {}]
  %s6 = inlined_call_operand.hbm [shape: f32[8,16], index: 6, kind: output, shape index: {}]
  %s7 = sld [smem:[#allocation0]]
  $region34: #{tpu_custom_call.1} parent=0
    _
  %s9 = ssub.s32 1, %s7
  %s10 = scalar_select 0, %s9, %s7
  $region1: #{tpu_custom_call.1} parent=0
    #allocation2 [shape = 'u8[4096]{0}', space=vmem, size = 0x1000, scoped, tag = 'output window, operand 0, single buffered']
    #allocation3 [shape = 's32[1]{0}', space=sflag, size = 0x4, scoped, tag = 'scoped memory for tpu_custom_call.1']
    %11 = vsyncpa [#allocation3], 0
    // Predicated region
    $region2: #{tpu_custom_call.1} parent=1 // pred_check
      _
    $region3: #{tpu_custom_call.1} parent=1 // pred_check_branch
      %13 = sbr.rel (0) target = $region5
    $region4: #{tpu_custom_call.1} parent=1 // pred_region
      _
    $region5: #{tpu_custom_call.1} parent=1 // pred_fallthru
      _
    // Predicated region
    $region6: #{tpu_custom_call.1} parent=1 // pred_check
      _
    $region7: #{tpu_custom_call.1} parent=1 // pred_check_branch
      %15 = sbr.rel (0) target = $region9
    $region8: #{tpu_custom_call.1} parent=1 // pred_region
      _
    $region9: #{tpu_custom_call.1} parent=1 // pred_fallthru
      _
    // Predicated region
    $region10: #{tpu_custom_call.1} parent=1 // pred_check
      _
    $region11: #{tpu_custom_call.1} parent=1 // pred_check_branch
      %17 = sbr.rel (0) target = $region13
    $region12: #{tpu_custom_call.1} parent=1 // pred_region
      _
    $region13: #{tpu_custom_call.1} parent=1 // pred_fallthru
      _
    // Predicated region
    $region14: #{tpu_custom_call.1} parent=1 // pred_check
      _
    $region15: #{tpu_custom_call.1} parent=1 // pred_check_branch
      %19 = sbr.rel (0) target = $region17
    $region16: #{tpu_custom_call.1} parent=1 // pred_region
      _
    $region17: #{tpu_custom_call.1} parent=1 // pred_fallthru
      _
    // Predicated region
    $region18: #{tpu_custom_call.1} parent=1 // pred_check
      _
    $region19: #{tpu_custom_call.1} parent=1 // pred_check_branch
      %21 = sbr.rel (0) target = $region21
    $region20: #{tpu_custom_call.1} parent=1 // pred_region
      _
    $region21: #{tpu_custom_call.1} parent=1 // pred_fallthru
      _
    // Predicated region
    $region22: #{tpu_custom_call.1} parent=1 // pred_check
      _
    $region23: #{tpu_custom_call.1} parent=1 // pred_check_branch
      %23 = sbr.rel (0) target = $region25
    $region24: #{tpu_custom_call.1} parent=1 // pred_region
      _
    $region25: #{tpu_custom_call.1} parent=1 // pred_fallthru
      _
    %v26 = vld [vmem:[%s0] sm:$0xff]
    %v27 = vld [vmem:[%s0 + $0x8] sm:$0xff]
    %v28 = vld [vmem:[%s0 + $0x10] sm:$0xff]
    %v29 = vld [vmem:[%s0 + $0x18] sm:$0xff]
    %v30 = vld [vmem:[%s1] sm:$0x3]
    %v31 = vld [vmem:[%s1 + $0x2] sm:$0x3]
    %v32 = vld [vmem:[%s1 + $0x4] sm:$0x3]
    %v33 = vld [vmem:[%s1 + $0x6] sm:$0x3]
    %s34 = smul.u32 0, 32
    %v35 = vlaneseq
    %v36 = vshrl.u32 %v35, 7
    %v37 = vadd.s32 %v36, 8
    %v38 = vadd.s32 %v36, 16
    %v39 = vadd.s32 %v36, 24
    %v40 = vstv %s34
    %v41 = vadd.s32 %v40, %v36
    %v42 = vadd.s32 %v40, %v37
    %v43 = vadd.s32 %v40, %v38
    %v44 = vadd.s32 %v40, %v39
    %vm45 = vnez %v30
    %vm46 = vnez %v31
    %vm47 = vnez %v32
    %vm48 = vnez %v33
    %vm49 = vcmp.lt.s32.totalorder %v41, 32
    %vm50 = vcmp.lt.s32.totalorder %v42, 32
    %vm51 = vcmp.lt.s32.totalorder %v43, 32
    %vm52 = vcmp.lt.s32.totalorder %v44, 32
    %vm53 = vmpackc.low %vm49, %vm49
    %vm54 = vmpackc.even %vm53, %vm53
    %vm55 = vmpackc.low %vm50, %vm50
    %vm56 = vmpackc.even %vm55, %vm55
    %vm57 = vmpackc.low %vm51, %vm51
    %vm58 = vmpackc.even %vm57, %vm57
    %vm59 = vmpackc.low %vm52, %vm52
    %vm60 = vmpackc.even %vm59, %vm59
    %vm61 = vmand %vm45, %vm54
    %vm62 = vmand %vm46, %vm56
    %vm63 = vmand %vm47, %vm58
    %vm64 = vmand %vm48, %vm60
    %v65 = vsel %vm61, 16843009, 0
    %v66 = vsel %vm62, 16843009, 0
    %v67 = vsel %vm63, 16843009, 0
    %v68 = vsel %vm64, 16843009, 0
    %v69 = vunpack.c.0.s8 %v65
    %v70 = vunpack.c.0.s8 %v66
    %v71 = vunpack.c.0.s8 %v67
    %v72 = vunpack.c.0.s8 %v68
    %vm73 = vcmp.ne.s32.totalorder %v69, 0
    %vm74 = vcmp.ne.s32.totalorder %v70, 0
    %vm75 = vcmp.ne.s32.totalorder %v71, 0
    %vm76 = vcmp.ne.s32.totalorder %v72, 0
    %v77 = vsel %vm73, 1, 0
    %v78 = vsel %vm74, 1, 0
    %v79 = vsel %vm75, 1, 0
    %v80 = vsel %vm76, 1, 0
    %81 = vset.pattern.permute.xlu0 0
    %82 = vperm.xlu0 %81, %v77
    %v83 = vpop.permute.xlu0 %82
    %84 = vset.pattern.permute.xlu0 0
    %85 = vperm.xlu0 %84, %v78
    %v86 = vpop.permute.xlu0 %85
    %87 = vset.pattern.permute.xlu0 0
    %88 = vperm.xlu0 %87, %v79
    %v89 = vpop.permute.xlu0 %88
    %90 = vset.pattern.permute.xlu0 0
    %91 = vperm.xlu0 %90, %v80
    %v92 = vpop.permute.xlu0 %91
    %vm93 = vcmp.eq.s32.totalorder %v83, 1
    %vm94 = vcmp.eq.s32.totalorder %v86, 1
    %vm95 = vcmp.eq.s32.totalorder %v89, 1
    %vm96 = vcmp.eq.s32.totalorder %v92, 1
    %v97 = vsel %vm93, 0.0, %v26
    %v98 = vsel %vm94, 0.0, %v27
    %v99 = vsel %vm95, 0.0, %v28
    %v100 = vsel %vm96, 0.0, %v29
    %v101 = vld [vmem:[%s2] sm:$0xff]
    %v102 = vld [vmem:[%s2 + $0x8] sm:$0xff]
    %v103 = vld [vmem:[%s3] sm:$0x1]
    %v105 = vlaneseq
    %v106 = vshrl.u32 %v105, 7
    %v107 = vsub.s32 0, %v106
    %v108 = vrot.slane %v103, %v107
    %vm110 = vcmask 130048
    %v112 = vsel %vm110, %v97, 0
    %v115 = vsel %vm110, %v98, 0
    %v118 = vsel %vm110, %v99, 0
    %v121 = vsel %vm110, %v100, 0
    %123 = vmatprep.subr.mxu0 0.0
    %124 = vmatpush1.msra.mxu0 0.0
    %125 = vmatprep.subr.mxu0 0.0
    %126 = vmatpush1.msra.mxu0 0.0
    %127 = vmatprep.subr.mxu0 0.0
    %128 = vmatpush1.msra.mxu0 0.0
    %129 = vmatprep.subr.mxu0 0.0
    %130 = vmatpush1.msra.mxu0 0.0
    %131 = vmatprep.subr.mxu0 0.0
    %132 = vmatpush1.msra.mxu0 0.0
    %133 = vmatprep.subr.mxu0 0.0
    %134 = vmatpush1.msra.mxu0 0.0
    %135 = vmatprep.subr.mxu0 0.0
    %136 = vmatpush1.msra.mxu0 0.0
    %137 = vmatprep.subr.mxu0 0.0
    %138 = vmatpush1.msra.mxu0 0.0
    %139 = vmatprep.subr.mxu0 0.0
    %140 = vmatpush1.msra.mxu0 0.0
    %141 = vmatprep.subr.mxu0 0.0
    %142 = vmatpush1.msra.mxu0 0.0
    %143 = vmatprep.subr.mxu0 0.0
    %144 = vmatpush1.msra.mxu0 0.0
    %145 = vmatprep.subr.mxu0 0.0
    %146 = vmatpush1.msra.mxu0 0.0
    %147 = vmatprep.subr.mxu0 0.0
    %148 = vmatpush1.msra.mxu0 0.0
    %149 = vmatprep.subr.mxu0 0.0
    %150 = vmatpush1.msra.mxu0 0.0
    %151 = vmatprep.subr.mxu0 0.0
    %152 = vmatpush1.msra.mxu0 %v102
    %153 = vmatprep.subr.mxu0 0.0
    %154 = vmatpush1.msra.mxu0 %v101
    %155 = vmatprep.subr.mxu0 0.0
    %156 = vmatpush2.msra.mxu0 0.0
    %157 = vmatprep.subr.mxu0 0.0
    %158 = vmatpush2.msra.mxu0 0.0
    %159 = vmatprep.subr.mxu0 0.0
    %160 = vmatpush2.msra.mxu0 0.0
    %161 = vmatprep.subr.mxu0 0.0
    %162 = vmatpush2.msra.mxu0 0.0
    %163 = vmatprep.subr.mxu0 0.0
    %164 = vmatpush2.msra.mxu0 0.0
    %165 = vmatprep.subr.mxu0 0.0
    %166 = vmatpush2.msra.mxu0 0.0
    %167 = vmatprep.subr.mxu0 0.0
    %168 = vmatpush2.msra.mxu0 0.0
    %169 = vmatprep.subr.mxu0 0.0
    %170 = vmatpush2.msra.mxu0 0.0
    %171 = vmatprep.subr.mxu0 0.0
    %172 = vmatpush2.msra.mxu0 0.0
    %173 = vmatprep.subr.mxu0 0.0
    %174 = vmatpush2.msra.mxu0 0.0
    %175 = vmatprep.subr.mxu0 0.0
    %176 = vmatpush2.msra.mxu0 0.0
    %177 = vmatprep.subr.mxu0 0.0
    %178 = vmatpush2.msra.mxu0 0.0
    %179 = vmatprep.subr.mxu0 0.0
    %180 = vmatpush2.msra.mxu0 0.0
    %181 = vmatprep.subr.mxu0 0.0
    %182 = vmatpush2.msra.mxu0 0.0
    %183 = vmatprep.subr.mxu0 0.0
    %184 = vmatpush2.msra.mxu0 0.0
    %185 = vmatprep.subr.mxu0 0.0
    %186 = vmatpush2.msra.mxu0 0.0
    %187 = vmatprep.mubr.f32.mxu0 0.0
    %188 = vmatmul.mubr.f32.gmra.mxu0 %v112
    %v189 = vpop.f32.mrf.mxu0
    %v190 = vadd.f32 %v108, %v189
    %v191 = vpop.f32.mrf.mxu0
    %192 = vmatprep.mubr.f32.mxu0 0.0
    %193 = vmatmul.mubr.f32.gmra.mxu0 %v115
    %v194 = vpop.f32.mrf.mxu0
    %v195 = vadd.f32 %v108, %v194
    %v196 = vpop.f32.mrf.mxu0
    %197 = vmatprep.mubr.f32.mxu0 0.0
    %198 = vmatmul.mubr.f32.gmra.mxu0 %v118
    %v199 = vpop.f32.mrf.mxu0
    %v200 = vadd.f32 %v108, %v199
    %v201 = vpop.f32.mrf.mxu0
    %202 = vmatprep.mubr.f32.mxu0 0.0
    %203 = vmatmul.mubr.f32.gmra.mxu0 %v121
    %v204 = vpop.f32.mrf.mxu0
    %v205 = vadd.f32 %v108, %v204
    %v206 = vpop.f32.mrf.mxu0
    %207 = vdwg.mxu0
    %v208 = vmax.f32 %v190, 0.0
    %v209 = vmax.f32 %v195, 0.0
    %v210 = vmax.f32 %v200, 0.0
    %v211 = vmax.f32 %v205, 0.0
    %v212 = vld [vmem:[%s4] sm:$0xff]
    %v213 = vld [vmem:[%s4 + $0x8] sm:$0xff]
    %v214 = vld [vmem:[%s4 + $0x10] sm:$0xff]
    %v215 = vld [vmem:[%s4 + $0x18] sm:$0xff]
    %v216 = vld [vmem:[%s4 + $0x20] sm:$0xff]
    %v217 = vld [vmem:[%s4 + $0x28] sm:$0xff]
    %v218 = vld [vmem:[%s4 + $0x30] sm:$0xff]
    %v219 = vld [vmem:[%s4 + $0x38] sm:$0xff]
    %v220 = vld [vmem:[%s4 + $0x40] sm:$0xff]
    %v221 = vld [vmem:[%s4 + $0x48] sm:$0xff]
    %v222 = vld [vmem:[%s4 + $0x50] sm:$0xff]
    %v223 = vld [vmem:[%s4 + $0x58] sm:$0xff]
    %v224 = vld [vmem:[%s4 + $0x60] sm:$0xff]
    %v225 = vld [vmem:[%s4 + $0x68] sm:$0xff]
    %v226 = vld [vmem:[%s4 + $0x70] sm:$0xff]
    %v227 = vld [vmem:[%s4 + $0x78] sm:$0xff]
    %v228 = vld [vmem:[%s5] sm:$0x1]
    %v230 = vlaneseq
    %v231 = vshrl.u32 %v230, 7
    %v232 = vsub.s32 0, %v231
    %v233 = vrot.slane %v228, %v232
    %235 = vmatprep.subr.mxu0 0.0
    %236 = vmatpush1.msra.mxu0 %v227
    %237 = vmatprep.subr.mxu0 0.0
    %238 = vmatpush1.msra.mxu0 %v226
    %239 = vmatprep.subr.mxu0 0.0
    %240 = vmatpush1.msra.mxu0 %v225
    %241 = vmatprep.subr.mxu0 0.0
    %242 = vmatpush1.msra.mxu0 %v224
    %243 = vmatprep.subr.mxu0 0.0
    %244 = vmatpush1.msra.mxu0 %v223
    %245 = vmatprep.subr.mxu0 0.0
    %246 = vmatpush1.msra.mxu0 %v222
    %247 = vmatprep.subr.mxu0 0.0
    %248 = vmatpush1.msra.mxu0 %v221
    %249 = vmatprep.subr.mxu0 0.0
    %250 = vmatpush1.msra.mxu0 %v220
    %251 = vmatprep.subr.mxu0 0.0
    %252 = vmatpush1.msra.mxu0 %v219
    %253 = vmatprep.subr.mxu0 0.0
    %254 = vmatpush1.msra.mxu0 %v218
    %255 = vmatprep.subr.mxu0 0.0
    %256 = vmatpush1.msra.mxu0 %v217
    %257 = vmatprep.subr.mxu0 0.0
    %258 = vmatpush1.msra.mxu0 %v216
    %259 = vmatprep.subr.mxu0 0.0
    %260 = vmatpush1.msra.mxu0 %v215
    %261 = vmatprep.subr.mxu0 0.0
    %262 = vmatpush1.msra.mxu0 %v214
    %263 = vmatprep.subr.mxu0 0.0
    %264 = vmatpush1.msra.mxu0 %v213
    %265 = vmatprep.subr.mxu0 0.0
    %266 = vmatpush1.msra.mxu0 %v212
    %267 = vmatprep.subr.mxu0 0.0
    %268 = vmatpush2.msra.mxu0 0.0
    %269 = vmatprep.subr.mxu0 0.0
    %270 = vmatpush2.msra.mxu0 0.0
    %271 = vmatprep.subr.mxu0 0.0
    %272 = vmatpush2.msra.mxu0 0.0
    %273 = vmatprep.subr.mxu0 0.0
    %274 = vmatpush2.msra.mxu0 0.0
    %275 = vmatprep.subr.mxu0 0.0
    %276 = vmatpush2.msra.mxu0 0.0
    %277 = vmatprep.subr.mxu0 0.0
    %278 = vmatpush2.msra.mxu0 0.0
    %279 = vmatprep.subr.mxu0 0.0
    %280 = vmatpush2.msra.mxu0 0.0
    %281 = vmatprep.subr.mxu0 0.0
    %282 = vmatpush2.msra.mxu0 0.0
    %283 = vmatprep.subr.mxu0 0.0
    %284 = vmatpush2.msra.mxu0 0.0
    %285 = vmatprep.subr.mxu0 0.0
    %286 = vmatpush2.msra.mxu0 0.0
    %287 = vmatprep.subr.mxu0 0.0
    %288 = vmatpush2.msra.mxu0 0.0
    %289 = vmatprep.subr.mxu0 0.0
    %290 = vmatpush2.msra.mxu0 0.0
    %291 = vmatprep.subr.mxu0 0.0
    %292 = vmatpush2.msra.mxu0 0.0
    %293 = vmatprep.subr.mxu0 0.0
    %294 = vmatpush2.msra.mxu0 0.0
    %295 = vmatprep.subr.mxu0 0.0
    %296 = vmatpush2.msra.mxu0 0.0
    %297 = vmatprep.subr.mxu0 0.0
    %298 = vmatpush2.msra.mxu0 0.0
    %299 = vmatprep.mubr.f32.mxu0 0.0
    %300 = vmatmul.mubr.f32.gmra.mxu0 %v208
    %v301 = vpop.f32.mrf.mxu0
    %v302 = vadd.f32 %v233, %v301
    %v303 = vpop.f32.mrf.mxu0
    %304 = vmatprep.mubr.f32.mxu0 0.0
    %305 = vmatmul.mubr.f32.gmra.mxu0 %v209
    %v306 = vpop.f32.mrf.mxu0
    %v307 = vadd.f32 %v233, %v306
    %v308 = vpop.f32.mrf.mxu0
    %309 = vmatprep.mubr.f32.mxu0 0.0
    %310 = vmatmul.mubr.f32.gmra.mxu0 %v210
    %v311 = vpop.f32.mrf.mxu0
    %v312 = vadd.f32 %v233, %v311
    %v313 = vpop.f32.mrf.mxu0
    %314 = vmatprep.mubr.f32.mxu0 0.0
    %315 = vmatmul.mubr.f32.gmra.mxu0 %v211
    %v316 = vpop.f32.mrf.mxu0
    %v317 = vadd.f32 %v233, %v316
    %v318 = vpop.f32.mrf.mxu0
    %319 = vdwg.mxu0
    %v320 = vsub.f32 %v302, %v26
    %v321 = vsub.f32 %v307, %v27
    %v322 = vsub.f32 %v312, %v28
    %v323 = vsub.f32 %v317, %v29
    %v324 = vmul.f32 %v320, %v320
    %v325 = vmul.f32 %v321, %v321
    %v326 = vmul.f32 %v322, %v322
    %v327 = vmul.f32 %v323, %v323
    %v328 = vsel %vm93, %v324, 0.0
    %v329 = vsel %vm94, %v325, 0.0
    %v330 = vsel %vm95, %v326, 0.0
    %v331 = vsel %vm96, %v327, 0.0
    %v332 = vsel %vm110, %v328, 0.0
    %v333 = vsel %vm110, %v329, 0.0
    %v334 = vadd.f32 %v332, %v333
    %v335 = vsel %vm110, %v330, 0.0
    %v336 = vadd.f32 %v334, %v335
    %v337 = vsel %vm110, %v331, 0.0
    %v338 = vadd.f32 %v336, %v337
    %339 = vst.msk [vmem:[#allocation2] sm:$0xff] %vm110, %v338
    // Predicated region
    $region26: #{tpu_custom_call.1} parent=1 // pred_check
      _
    $region27: #{tpu_custom_call.1} parent=1 // pred_check_branch
      %341 = sbr.rel (0) target = $region29
    $region28: #{tpu_custom_call.1} parent=1 // pred_region
      %s343 = ssub.s32 128, 128
      %344 = vsyncadd [#allocation3], %s343
      %s346 = sshll.u32 [#allocation2], 4
      %s347 = int_to_ptr.vmem [resolvable:$true] %s346
      %349 = dma.vmem_to_hbm [thread:$0]  %s347, 128, %s6, [#allocation3]
    $region29: #{tpu_custom_call.1} parent=1 // pred_fallthru
      _
    // Predicated region
    $region30: #{tpu_custom_call.1} parent=1 // pred_check
      _
    $region31: #{tpu_custom_call.1} parent=1 // pred_check_branch
      %351 = sbr.rel (0) target = $region33
    $region32: #{tpu_custom_call.1} parent=1 // pred_region
      %352 = dma.done [#allocation3], 128
    $region33: #{tpu_custom_call.1} parent=1 // pred_fallthru
      _
    %353 = vsyncpa [#allocation3], 1

</llo_original>
